<compile_context>
chip_gen: v6e
topology: v6e:2x2x1
jax: 0.10.0
libtpu: 0.0.40
codegen_flags: <defaults>
</compile_context>

<pallas_src>
import jax
import jax.numpy as jnp
from jax.experimental import pallas as pl
from jax.experimental.pallas import tpu as pltpu

LANE = 128                          # lane width for the hidden dimension
HIDDEN = 50
IN_W = 8                            # obs_size (4) padded to one 8-wide block
OUT_W = 8                           # n_actions (2) padded to 8 output lanes
PARAM_ROWS = IN_W + 2 * LANE + 8    # W1(8) + W2(128) + W3(128) + biases(8) = 272


def _round_up(n, m):
    return ((n + m - 1) // m) * m


def qfunction_kernel(x_ref, p_ref, q_ref):
    # x_ref: (TB, 8)   observations, zero-padded to 8 lanes
    # p_ref: (272,128) packed parameter slab, VMEM-resident (constant index_map)
    # q_ref: (TB, 8)   q-values in lanes [0, n_actions)
    x = x_ref[...]

    w1 = p_ref[0:IN_W, :]                            # (8, 128)
    w2 = p_ref[IN_W:IN_W + LANE, :]                  # (128, 128)
    w3 = p_ref[IN_W + LANE:IN_W + 2 * LANE, :]       # (128, 128)
    bias = p_ref[IN_W + 2 * LANE:PARAM_ROWS, :]      # aligned (8, 128) block
    b1 = bias[0:1, :]
    b2 = bias[1:2, :]
    b3 = bias[2:3, :]

    h1 = jnp.dot(x, w1, preferred_element_type=jnp.float32)
    h1 = jnp.maximum(h1 + b1, 0.0)

    h2 = jnp.dot(h1.astype(w2.dtype), w2, preferred_element_type=jnp.float32)
    h2 = jnp.maximum(h2 + b2, 0.0)

    q = jnp.dot(h2.astype(w3.dtype), w3, preferred_element_type=jnp.float32) + b3

    # Only the first OUT_W lanes are real; store the narrow tile (16x less HBM).
    q_ref[...] = q[:, :q_ref.shape[1]].astype(q_ref.dtype)


def qfunction_forward(x, param_slab, n_actions, *, block_batch=1024):
    """x: (B, obs_size) float. Returns (B, n_actions) f32 q-values."""
    B, obs = x.shape
    assert obs <= IN_W, "obs_size must fit the 8-wide input block"
    assert n_actions <= OUT_W, "n_actions must fit the 8-wide output block"

    # Batch tile: multiple of 8; don't inflate small batches; for larger
    # batches keep >= 2 grid steps so the parallel axis can use both v7x TCs.
    B8 = _round_up(B, 8)
    if B8 <= 16:
        TB = B8
    else:
        TB = min(block_batch, _round_up((B8 + 1) // 2, 8))
    B_pad = _round_up(B, TB)

    # Pad once, outside the kernel (zero rows/lanes are exact for this MLP).
    x_pad = jnp.zeros((B_pad, IN_W), param_slab.dtype).at[:B, :obs].set(
        x.astype(param_slab.dtype))

    out = pl.pallas_call(
        qfunction_kernel,
        out_shape=jax.ShapeDtypeStruct((B_pad, OUT_W), jnp.float32),
        grid=(B_pad // TB,),
        in_specs=[
            pl.BlockSpec((TB, IN_W), lambda i: (i, 0)),           # x tiles
            pl.BlockSpec((PARAM_ROWS, LANE), lambda i: (0, 0)),   # resident weights
        ],
        out_specs=pl.BlockSpec((TB, OUT_W), lambda i: (i, 0)),
        compiler_params=pltpu.CompilerParams(
            dimension_semantics=("parallel",)),
    )(x_pad, param_slab)

    return out[:B, :n_actions]


def init_params(key, obs_size, n_actions, hidden=HIDDEN):
    """Deterministic init mimicking torch.nn.Linear default U(-1/sqrt(fan_in), +)."""
    def linear(k, fan_in, fan_out):
        kw, kb = jax.random.split(k)
        bound = 1.0 / jnp.sqrt(float(fan_in))
        w = jax.random.uniform(kw, (fan_in, fan_out), jnp.float32,
                               minval=-bound, maxval=bound)
        b = jax.random.uniform(kb, (fan_out,), jnp.float32,
                               minval=-bound, maxval=bound)
        return w, b

    k1, k2, k3 = jax.random.split(key, 3)
    w1, b1 = linear(k1, obs_size, hidden)
    w2, b2 = linear(k2, hidden, hidden)
    w3, b3 = linear(k3, hidden, n_actions)
    return (w1, b1, w2, b2, w3, b3)


def pack_params(params, obs_size, n_actions, hidden=HIDDEN,
                storage_dtype=jnp.float32):
    """Pack weights/biases into one lane/sublane-aligned (272, 128) slab.

    Rows [0,8)=W1, [8,136)=W2, [136,264)=W3, 264..266 = b1,b2,b3, rest zero.
    Use storage_dtype=jnp.bfloat16 on v5e/v6e (f32 accumulation kept in-kernel).
    """
    w1, b1, w2, b2, w3, b3 = params
    assert obs_size <= IN_W, "obs_size must fit the 8-wide W1 block"
    assert hidden <= LANE, "hidden must fit 128 lanes"
    assert n_actions <= OUT_W, "n_actions must fit the 8-wide output block"

    slab = jnp.zeros((PARAM_ROWS, LANE), jnp.float32)
    slab = slab.at[:obs_size, :hidden].set(w1)
    slab = slab.at[IN_W:IN_W + hidden, :hidden].set(w2)
    slab = slab.at[IN_W + LANE:IN_W + LANE + hidden, :n_actions].set(w3)
    r = IN_W + 2 * LANE
    slab = slab.at[r, :hidden].set(b1)
    slab = slab.at[r + 1, :hidden].set(b2)
    slab = slab.at[r + 2, :n_actions].set(b3)
    return slab.astype(storage_dtype)


def qfunction_ref(x, params):
    """Pure-JAX reference for correctness check."""
    w1, b1, w2, b2, w3, b3 = params
    h = jnp.maximum(x @ w1 + b1, 0.0)
    h = jnp.maximum(h @ w2 + b2, 0.0)
    return h @ w3 + b3


if __name__ == "__main__":
    # CartPole-v0: obs_size = 4, n_actions = 2.
    OBS_SIZE, N_ACTIONS, BATCH = 4, 2, 8

    key = jax.random.PRNGKey(0)
    kx, kp = jax.random.split(key)
    x = jax.random.normal(kx, (BATCH, OBS_SIZE), jnp.float32)
    params = init_params(kp, OBS_SIZE, N_ACTIONS)
    slab = pack_params(params, OBS_SIZE, N_ACTIONS)  # f32 storage for strict check

    # TODO(synk): pfrl.action_value.DiscreteActionValue has no Pallas
    # equivalent; the kernel returns the raw q-value tensor it wraps.
    q = qfunction_forward(x, slab, N_ACTIONS)
    q = jax.block_until_ready(q)

    q_ref = qfunction_ref(x, params)
    assert q.shape == (BATCH, N_ACTIONS)
    assert jnp.allclose(q, q_ref, atol=1e-5, rtol=1e-5), "mismatch vs reference"

    print("KERNEL_OK")
</pallas_src>

<mosaic_0001>
module attributes {stable_mosaic.version = 11 : i64} {
  func.func @qfunction_kernel(%arg0: i32, %arg1: memref<8x8xf32, #tpu.memory_space<vmem>>, %arg2: memref<272x128xf32, #tpu.memory_space<vmem>>, %arg3: memref<8x8xf32, #tpu.memory_space<vmem>>) attributes {dimension_semantics = [#tpu.dimension_semantics<parallel>], iteration_bounds = array<i64: 1>, scalar_prefetch = 0 : i64, scratch_operands = 0 : i64, tpu.core_type = #tpu.core_type<tc>, window_params = [{transform_indices = @transform_0, window_bounds = array<i64: 8, 8>}, {pipeline_mode = #tpu.pipeline_mode<synchronous>, transform_indices = @transform_1, window_bounds = array<i64: 272, 128>}, {transform_indices = @transform_2, window_bounds = array<i64: 8, 8>}]} {
    %c0 = arith.constant 0 : index
    %c0_0 = arith.constant 0 : index
    %0 = vector.load %arg1[%c0, %c0_0] : memref<8x8xf32, #tpu.memory_space<vmem>>, vector<8x8xf32>
    %c0_1 = arith.constant 0 : index
    %c0_2 = arith.constant 0 : index
    %1 = vector.load %arg2[%c0_1, %c0_2] : memref<272x128xf32, #tpu.memory_space<vmem>>, vector<8x128xf32>
    %c8 = arith.constant 8 : index
    %c0_3 = arith.constant 0 : index
    %2 = vector.load %arg2[%c8, %c0_3] : memref<272x128xf32, #tpu.memory_space<vmem>>, vector<128x128xf32>
    %c136 = arith.constant 136 : index
    %c0_4 = arith.constant 0 : index
    %3 = vector.load %arg2[%c136, %c0_4] : memref<272x128xf32, #tpu.memory_space<vmem>>, vector<128x128xf32>
    %c264 = arith.constant 264 : index
    %c0_5 = arith.constant 0 : index
    %4 = vector.load %arg2[%c264, %c0_5] : memref<272x128xf32, #tpu.memory_space<vmem>>, vector<8x128xf32>
    %5 = vector.extract_strided_slice %4 {offsets = [0, 0], sizes = [1, 128], strides = [1, 1]} : vector<8x128xf32> to vector<1x128xf32>
    %6 = vector.extract_strided_slice %4 {offsets = [1, 0], sizes = [1, 128], strides = [1, 1]} : vector<8x128xf32> to vector<1x128xf32>
    %7 = vector.extract_strided_slice %4 {offsets = [2, 0], sizes = [1, 128], strides = [1, 1]} : vector<8x128xf32> to vector<1x128xf32>
    %cst = arith.constant dense<0.000000e+00> : vector<8x128xf32>
    %8 = tpu.matmul %0, %1, %cst {dimension_numbers = #tpu.dot_dimension_numbers<[1], [0], [0], [1], [0, 0, 1, 1], [], []>} : vector<8x8xf32>, vector<8x128xf32>, vector<8x128xf32> -> vector<8x128xf32>
    %9 = vector.broadcast %5 : vector<1x128xf32> to vector<8x128xf32>
    %10 = arith.addf %8, %9 : vector<8x128xf32>
    %cst_6 = arith.constant 0.000000e+00 : f32
    %11 = vector.broadcast %cst_6 : f32 to vector<8x128xf32>
    %12 = arith.maximumf %10, %11 : vector<8x128xf32>
    %cst_7 = arith.constant dense<0.000000e+00> : vector<8x128xf32>
    %13 = tpu.matmul %12, %2, %cst_7 {dimension_numbers = #tpu.dot_dimension_numbers<[1], [0], [0], [1], [0, 0, 1, 1], [], []>} : vector<8x128xf32>, vector<128x128xf32>, vector<8x128xf32> -> vector<8x128xf32>
    %14 = vector.broadcast %6 : vector<1x128xf32> to vector<8x128xf32>
    %15 = arith.addf %13, %14 : vector<8x128xf32>
    %cst_8 = arith.constant 0.000000e+00 : f32
    %16 = vector.broadcast %cst_8 : f32 to vector<8x128xf32>
    %17 = arith.maximumf %15, %16 : vector<8x128xf32>
    %cst_9 = arith.constant dense<0.000000e+00> : vector<8x128xf32>
    %18 = tpu.matmul %17, %3, %cst_9 {dimension_numbers = #tpu.dot_dimension_numbers<[1], [0], [0], [1], [0, 0, 1, 1], [], []>} : vector<8x128xf32>, vector<128x128xf32>, vector<8x128xf32> -> vector<8x128xf32>
    %19 = vector.broadcast %7 : vector<1x128xf32> to vector<8x128xf32>
    %20 = arith.addf %18, %19 : vector<8x128xf32>
    %21 = vector.extract_strided_slice %20 {offsets = [0, 0], sizes = [8, 8], strides = [1, 1]} : vector<8x128xf32> to vector<8x8xf32>
    %c0_10 = arith.constant 0 : index
    %c0_11 = arith.constant 0 : index
    %22 = vector.load %arg3[%c0_10, %c0_11] : memref<8x8xf32, #tpu.memory_space<vmem>>, vector<8x8xf32>
    tpu.vector_store %arg3[%c0_10, %c0_11], %21 {strides = array<i32>} : memref<8x8xf32, #tpu.memory_space<vmem>>, vector<8x8xf32>,
    return
  }
  func.func @transform_0(%arg0: i32) -> (i32, i32) {
    %c0_i32 = arith.constant 0 : i32
    %c0_i32_0 = arith.constant 0 : i32
    return %arg0, %c0_i32 : i32, i32
  }
  func.func @transform_1(%arg0: i32) -> (i32, i32) {
    %c0_i32 = arith.constant 0 : i32
    %c0_i32_0 = arith.constant 0 : i32
    %c0_i32_1 = arith.constant 0 : i32
    return %c0_i32, %c0_i32_0 : i32, i32
  }
  func.func @transform_2(%arg0: i32) -> (i32, i32) {
    %c0_i32 = arith.constant 0 : i32
    %c0_i32_0 = arith.constant 0 : i32
    return %arg0, %c0_i32 : i32, i32
  }
}

</mosaic_0001>

<llo_original>
// kernel: tpu_custom_call.1
$region0: #{tpu_custom_call.1}
  #allocation0 [shape = 'u32[]', space=smem, size = 0x4, offset = 0x4, fixed_abs, tag = 'smem constant byte address 0x4 - core index']
  #allocation1 [shape = 'u32[144,128]{1,0:T(1,128)}', space=vmem, size = 0x12000, scoped, tag = 'internal scratch']
  %s0 = inlined_call_operand.hbm [shape: f32[8,8], index: 0, kind: input, shape index: {}]
  %s1 = inlined_call_operand.hbm [shape: f32[272,128], index: 1, kind: input, shape index: {}]
  %s2 = inlined_call_operand.hbm [shape: f32[8,8], index: 2, kind: output, shape index: {}]
  %s3 = sld [smem:[#allocation0]]
  $region26: #{tpu_custom_call.1} parent=0
    _
  %s5 = ssub.s32 1, %s3
  %s6 = scalar_select 0, %s5, %s3
  $region1: #{tpu_custom_call.1} parent=0
    #allocation2 [shape = 'u8[4096]{0}', space=vmem, size = 0x1000, scoped, tag = 'input window, operand 0, single buffered']
    #allocation3 [shape = 's32[1]{0}', space=sflag, size = 0x4, scoped, tag = 'scoped memory for tpu_custom_call.1']
    #allocation4 [shape = 's32[1]{0}', space=sflag, size = 0x4, scoped, tag = 'scoped memory for tpu_custom_call.1']
    #allocation5 [shape = 'u8[139264]{0}', space=vmem, size = 0x22000, scoped, tag = 'input window, operand 1, single buffered']
    #allocation6 [shape = 's32[1]{0}', space=sflag, size = 0x4, scoped, tag = 'scoped memory for tpu_custom_call.1']
    #allocation7 [shape = 'u8[4096]{0}', space=vmem, size = 0x1000, scoped, tag = 'output window, operand 0, single buffered']
    %7 = vsyncpa [#allocation3], 0
    %8 = vsyncpa [#allocation6], 0
    %9 = vsyncpa [#allocation4], 0
    // Predicated region
    $region2: #{tpu_custom_call.1} parent=1 // pred_check
      _
    $region3: #{tpu_custom_call.1} parent=1 // pred_check_branch
      %11 = sbr.rel (0) target = $region5
    $region4: #{tpu_custom_call.1} parent=1 // pred_region
      %s13 = ssub.s32 128, 128
      %14 = vsyncadd [#allocation3], %s13
      %s16 = sshll.u32 [#allocation2], 4
      %s17 = int_to_ptr.vmem [resolvable:$true] %s16
      %19 = dma.hbm_to_vmem [thread:$0]  %s0, 128, %s17, [#allocation3]
    $region5: #{tpu_custom_call.1} parent=1 // pred_fallthru
      _
    // Predicated region
    $region6: #{tpu_custom_call.1} parent=1 // pred_check
      _
    $region7: #{tpu_custom_call.1} parent=1 // pred_check_branch
      %21 = sbr.rel (0) target = $region9
    $region8: #{tpu_custom_call.1} parent=1 // pred_region
      %s23 = ssub.s32 4352, 4352
      %24 = vsyncadd [#allocation6], %s23
      %s25 = sshll.u32 [#allocation5], 4
      %s26 = int_to_ptr.vmem [resolvable:$true] %s25
      %31 = dma.hbm_to_vmem [thread:$0]  %s1, 4352, %s26, [#allocation6], 128, 128, 8
    $region9: #{tpu_custom_call.1} parent=1 // pred_fallthru
      _
    // Predicated region
    $region10: #{tpu_custom_call.1} parent=1 // pred_check
      _
    $region11: #{tpu_custom_call.1} parent=1 // pred_check_branch
      %33 = sbr.rel (0) target = $region13
    $region12: #{tpu_custom_call.1} parent=1 // pred_region
      %34 = dma.done [#allocation3], 128
    $region13: #{tpu_custom_call.1} parent=1 // pred_fallthru
      _
    // Predicated region
    $region14: #{tpu_custom_call.1} parent=1 // pred_check
      _
    $region15: #{tpu_custom_call.1} parent=1 // pred_check_branch
      %36 = sbr.rel (0) target = $region17
    $region16: #{tpu_custom_call.1} parent=1 // pred_region
      %37 = dma.done [#allocation6], 4352
    $region17: #{tpu_custom_call.1} parent=1 // pred_fallthru
      _
    %v38 = vld [vmem:[#allocation2] sm:$0xff]
    %v39 = vld [vmem:[#allocation5] sm:$0xff]
    %v40 = vld [vmem:[#allocation5 + $0x8] sm:$0xff]
    %v41 = vld [vmem:[#allocation5 + $0x10] sm:$0xff]
    %v42 = vld [vmem:[#allocation5 + $0x18] sm:$0xff]
    %v43 = vld [vmem:[#allocation5 + $0x20] sm:$0xff]
    %v44 = vld [vmem:[#allocation5 + $0x28] sm:$0xff]
    %v45 = vld [vmem:[#allocation5 + $0x30] sm:$0xff]
    %v46 = vld [vmem:[#allocation5 + $0x38] sm:$0xff]
    %v47 = vld [vmem:[#allocation5 + $0x40] sm:$0xff]
    %v48 = vld [vmem:[#allocation5 + $0x48] sm:$0xff]
    %v49 = vld [vmem:[#allocation5 + $0x50] sm:$0xff]
    %v50 = vld [vmem:[#allocation5 + $0x58] sm:$0xff]
    %v51 = vld [vmem:[#allocation5 + $0x60] sm:$0xff]
    %v52 = vld [vmem:[#allocation5 + $0x68] sm:$0xff]
    %v53 = vld [vmem:[#allocation5 + $0x70] sm:$0xff]
    %v54 = vld [vmem:[#allocation5 + $0x78] sm:$0xff]
    %v55 = vld [vmem:[#allocation5 + $0x80] sm:$0xff]
    %v56 = vld [vmem:[#allocation5 + $0x88] sm:$0xff]
    %v57 = vld [vmem:[#allocation5 + $0x90] sm:$0xff]
    %v58 = vld [vmem:[#allocation5 + $0x98] sm:$0xff]
    %v59 = vld [vmem:[#allocation5 + $0xa0] sm:$0xff]
    %v60 = vld [vmem:[#allocation5 + $0xa8] sm:$0xff]
    %v61 = vld [vmem:[#allocation5 + $0xb0] sm:$0xff]
    %v62 = vld [vmem:[#allocation5 + $0xb8] sm:$0xff]
    %v63 = vld [vmem:[#allocation5 + $0xc0] sm:$0xff]
    %v64 = vld [vmem:[#allocation5 + $0xc8] sm:$0xff]
    %v65 = vld [vmem:[#allocation5 + $0xd0] sm:$0xff]
    %v66 = vld [vmem:[#allocation5 + $0xd8] sm:$0xff]
    %v67 = vld [vmem:[#allocation5 + $0xe0] sm:$0xff]
    %v68 = vld [vmem:[#allocation5 + $0xe8] sm:$0xff]
    %v69 = vld [vmem:[#allocation5 + $0xf0] sm:$0xff]
    %v70 = vld [vmem:[#allocation5 + $0xf8] sm:$0xff]
    %v71 = vld [vmem:[#allocation5 + $0x100] sm:$0xff]
    %v72 = vld [vmem:[#allocation5 + $0x108] sm:$0xff]
    %v73 = vlaneseq
    %v74 = vshrl.u32 %v73, 7
    %v75 = vsub.s32 0, %v74
    %v76 = vrot.slane %v72, %v75
    %vm77 = vcmask 64512
    %v79 = vsel %vm77, %v38, 0
    %81 = vmatprep.subr.mxu0 0.0
    %82 = vmatpush1.msra.mxu0 0.0
    %83 = vmatprep.subr.mxu0 0.0
    %84 = vmatpush1.msra.mxu0 0.0
    %85 = vmatprep.subr.mxu0 0.0
    %86 = vmatpush1.msra.mxu0 0.0
    %87 = vmatprep.subr.mxu0 0.0
    %88 = vmatpush1.msra.mxu0 0.0
    %89 = vmatprep.subr.mxu0 0.0
    %90 = vmatpush1.msra.mxu0 0.0
    %91 = vmatprep.subr.mxu0 0.0
    %92 = vmatpush1.msra.mxu0 0.0
    %93 = vmatprep.subr.mxu0 0.0
    %94 = vmatpush1.msra.mxu0 0.0
    %95 = vmatprep.subr.mxu0 0.0
    %96 = vmatpush1.msra.mxu0 0.0
    %97 = vmatprep.subr.mxu0 0.0
    %98 = vmatpush1.msra.mxu0 0.0
    %99 = vmatprep.subr.mxu0 0.0
    %100 = vmatpush1.msra.mxu0 0.0
    %101 = vmatprep.subr.mxu0 0.0
    %102 = vmatpush1.msra.mxu0 0.0
    %103 = vmatprep.subr.mxu0 0.0
    %104 = vmatpush1.msra.mxu0 0.0
    %105 = vmatprep.subr.mxu0 0.0
    %106 = vmatpush1.msra.mxu0 0.0
    %107 = vmatprep.subr.mxu0 0.0
    %108 = vmatpush1.msra.mxu0 0.0
    %109 = vmatprep.subr.mxu0 0.0
    %110 = vmatpush1.msra.mxu0 0.0
    %111 = vmatprep.subr.mxu0 0.0
    %112 = vmatpush1.msra.mxu0 %v39
    %113 = vmatprep.subr.mxu0 0.0
    %114 = vmatpush2.msra.mxu0 0.0
    %115 = vmatprep.subr.mxu0 0.0
    %116 = vmatpush2.msra.mxu0 0.0
    %117 = vmatprep.subr.mxu0 0.0
    %118 = vmatpush2.msra.mxu0 0.0
    %119 = vmatprep.subr.mxu0 0.0
    %120 = vmatpush2.msra.mxu0 0.0
    %121 = vmatprep.subr.mxu0 0.0
    %122 = vmatpush2.msra.mxu0 0.0
    %123 = vmatprep.subr.mxu0 0.0
    %124 = vmatpush2.msra.mxu0 0.0
    %125 = vmatprep.subr.mxu0 0.0
    %126 = vmatpush2.msra.mxu0 0.0
    %127 = vmatprep.subr.mxu0 0.0
    %128 = vmatpush2.msra.mxu0 0.0
    %129 = vmatprep.subr.mxu0 0.0
    %130 = vmatpush2.msra.mxu0 0.0
    %131 = vmatprep.subr.mxu0 0.0
    %132 = vmatpush2.msra.mxu0 0.0
    %133 = vmatprep.subr.mxu0 0.0
    %134 = vmatpush2.msra.mxu0 0.0
    %135 = vmatprep.subr.mxu0 0.0
    %136 = vmatpush2.msra.mxu0 0.0
    %137 = vmatprep.subr.mxu0 0.0
    %138 = vmatpush2.msra.mxu0 0.0
    %139 = vmatprep.subr.mxu0 0.0
    %140 = vmatpush2.msra.mxu0 0.0
    %141 = vmatprep.subr.mxu0 0.0
    %142 = vmatpush2.msra.mxu0 0.0
    %143 = vmatprep.subr.mxu0 0.0
    %144 = vmatpush2.msra.mxu0 0.0
    %145 = vmatprep.mubr.f32.mxu0 0.0
    %146 = vmatmul.mubr.f32.gmra.mxu0 %v79
    %v147 = vpop.f32.mrf.mxu0
    %v148 = vadd.f32 %v76, %v147
    %v149 = vpop.f32.mrf.mxu0
    %150 = vdwg.mxu0
    %v151 = vmax.f32 %v148, 0.0
    %v152 = vlaneseq
    %v153 = vshrl.u32 %v152, 7
    %v154 = vsub.s32 1, %v153
    %v155 = vrot.slane %v72, %v154
    %156 = vmatprep.subr.mxu0 0.0
    %157 = vmatpush1.msra.mxu0 %v55
    %158 = vmatprep.subr.mxu0 0.0
    %159 = vmatpush1.msra.mxu0 %v54
    %160 = vmatprep.subr.mxu0 0.0
    %161 = vmatpush1.msra.mxu0 %v53
    %162 = vmatprep.subr.mxu0 0.0
    %163 = vmatpush1.msra.mxu0 %v52
    %164 = vmatprep.subr.mxu0 0.0
    %165 = vmatpush1.msra.mxu0 %v51
    %166 = vmatprep.subr.mxu0 0.0
    %167 = vmatpush1.msra.mxu0 %v50
    %168 = vmatprep.subr.mxu0 0.0
    %169 = vmatpush1.msra.mxu0 %v49
    %170 = vmatprep.subr.mxu0 0.0
    %171 = vmatpush1.msra.mxu0 %v48
    %172 = vmatprep.subr.mxu0 0.0
    %173 = vmatpush1.msra.mxu0 %v47
    %174 = vmatprep.subr.mxu0 0.0
    %175 = vmatpush1.msra.mxu0 %v46
    %176 = vmatprep.subr.mxu0 0.0
    %177 = vmatpush1.msra.mxu0 %v45
    %178 = vmatprep.subr.mxu0 0.0
    %179 = vmatpush1.msra.mxu0 %v44
    %180 = vmatprep.subr.mxu0 0.0
    %181 = vmatpush1.msra.mxu0 %v43
    %182 = vmatprep.subr.mxu0 0.0
    %183 = vmatpush1.msra.mxu0 %v42
    %184 = vmatprep.subr.mxu0 0.0
    %185 = vmatpush1.msra.mxu0 %v41
    %186 = vmatprep.subr.mxu0 0.0
    %187 = vmatpush1.msra.mxu0 %v40
    %188 = vmatprep.subr.mxu0 0.0
    %189 = vmatpush2.msra.mxu0 0.0
    %190 = vmatprep.subr.mxu0 0.0
    %191 = vmatpush2.msra.mxu0 0.0
    %192 = vmatprep.subr.mxu0 0.0
    %193 = vmatpush2.msra.mxu0 0.0
    %194 = vmatprep.subr.mxu0 0.0
    %195 = vmatpush2.msra.mxu0 0.0
    %196 = vmatprep.subr.mxu0 0.0
    %197 = vmatpush2.msra.mxu0 0.0
    %198 = vmatprep.subr.mxu0 0.0
    %199 = vmatpush2.msra.mxu0 0.0
    %200 = vmatprep.subr.mxu0 0.0
    %201 = vmatpush2.msra.mxu0 0.0
    %202 = vmatprep.subr.mxu0 0.0
    %203 = vmatpush2.msra.mxu0 0.0
    %204 = vmatprep.subr.mxu0 0.0
    %205 = vmatpush2.msra.mxu0 0.0
    %206 = vmatprep.subr.mxu0 0.0
    %207 = vmatpush2.msra.mxu0 0.0
    %208 = vmatprep.subr.mxu0 0.0
    %209 = vmatpush2.msra.mxu0 0.0
    %210 = vmatprep.subr.mxu0 0.0
    %211 = vmatpush2.msra.mxu0 0.0
    %212 = vmatprep.subr.mxu0 0.0
    %213 = vmatpush2.msra.mxu0 0.0
    %214 = vmatprep.subr.mxu0 0.0
    %215 = vmatpush2.msra.mxu0 0.0
    %216 = vmatprep.subr.mxu0 0.0
    %217 = vmatpush2.msra.mxu0 0.0
    %218 = vmatprep.subr.mxu0 0.0
    %219 = vmatpush2.msra.mxu0 0.0
    %220 = vmatprep.mubr.f32.mxu0 0.0
    %221 = vmatmul.mubr.f32.gmra.mxu0 %v151
    %v222 = vpop.f32.mrf.mxu0
    %v223 = vadd.f32 %v155, %v222
    %v224 = vpop.f32.mrf.mxu0
    %225 = vdwg.mxu0
    %v226 = vmax.f32 %v223, 0.0
    %v227 = vlaneseq
    %v228 = vshrl.u32 %v227, 7
    %v229 = vsub.s32 2, %v228
    %v230 = vrot.slane %v72, %v229
    %231 = vmatprep.subr.mxu0 0.0
    %232 = vmatpush1.msra.mxu0 %v71
    %233 = vmatprep.subr.mxu0 0.0
    %234 = vmatpush1.msra.mxu0 %v70
    %235 = vmatprep.subr.mxu0 0.0
    %236 = vmatpush1.msra.mxu0 %v69
    %237 = vmatprep.subr.mxu0 0.0
    %238 = vmatpush1.msra.mxu0 %v68
    %239 = vmatprep.subr.mxu0 0.0
    %240 = vmatpush1.msra.mxu0 %v67
    %241 = vmatprep.subr.mxu0 0.0
    %242 = vmatpush1.msra.mxu0 %v66
    %243 = vmatprep.subr.mxu0 0.0
    %244 = vmatpush1.msra.mxu0 %v65
    %245 = vmatprep.subr.mxu0 0.0
    %246 = vmatpush1.msra.mxu0 %v64
    %247 = vmatprep.subr.mxu0 0.0
    %248 = vmatpush1.msra.mxu0 %v63
    %249 = vmatprep.subr.mxu0 0.0
    %250 = vmatpush1.msra.mxu0 %v62
    %251 = vmatprep.subr.mxu0 0.0
    %252 = vmatpush1.msra.mxu0 %v61
    %253 = vmatprep.subr.mxu0 0.0
    %254 = vmatpush1.msra.mxu0 %v60
    %255 = vmatprep.subr.mxu0 0.0
    %256 = vmatpush1.msra.mxu0 %v59
    %257 = vmatprep.subr.mxu0 0.0
    %258 = vmatpush1.msra.mxu0 %v58
    %259 = vmatprep.subr.mxu0 0.0
    %260 = vmatpush1.msra.mxu0 %v57
    %261 = vmatprep.subr.mxu0 0.0
    %262 = vmatpush1.msra.mxu0 %v56
    %263 = vmatprep.subr.mxu0 0.0
    %264 = vmatpush2.msra.mxu0 0.0
    %265 = vmatprep.subr.mxu0 0.0
    %266 = vmatpush2.msra.mxu0 0.0
    %267 = vmatprep.subr.mxu0 0.0
    %268 = vmatpush2.msra.mxu0 0.0
    %269 = vmatprep.subr.mxu0 0.0
    %270 = vmatpush2.msra.mxu0 0.0
    %271 = vmatprep.subr.mxu0 0.0
    %272 = vmatpush2.msra.mxu0 0.0
    %273 = vmatprep.subr.mxu0 0.0
    %274 = vmatpush2.msra.mxu0 0.0
    %275 = vmatprep.subr.mxu0 0.0
    %276 = vmatpush2.msra.mxu0 0.0
    %277 = vmatprep.subr.mxu0 0.0
    %278 = vmatpush2.msra.mxu0 0.0
    %279 = vmatprep.subr.mxu0 0.0
    %280 = vmatpush2.msra.mxu0 0.0
    %281 = vmatprep.subr.mxu0 0.0
    %282 = vmatpush2.msra.mxu0 0.0
    %283 = vmatprep.subr.mxu0 0.0
    %284 = vmatpush2.msra.mxu0 0.0
    %285 = vmatprep.subr.mxu0 0.0
    %286 = vmatpush2.msra.mxu0 0.0
    %287 = vmatprep.subr.mxu0 0.0
    %288 = vmatpush2.msra.mxu0 0.0
    %289 = vmatprep.subr.mxu0 0.0
    %290 = vmatpush2.msra.mxu0 0.0
    %291 = vmatprep.subr.mxu0 0.0
    %292 = vmatpush2.msra.mxu0 0.0
    %293 = vmatprep.subr.mxu0 0.0
    %294 = vmatpush2.msra.mxu0 0.0
    %295 = vmatprep.mubr.f32.mxu0 0.0
    %296 = vmatmul.mubr.f32.gmra.mxu0 %v226
    %v297 = vpop.f32.mrf.mxu0
    %v298 = vadd.f32 %v230, %v297
    %v299 = vpop.f32.mrf.mxu0
    %300 = vdwg.mxu0
    %301 = vst.msk [vmem:[#allocation7] sm:$0xff] %vm77, %v298
    // Predicated region
    $region18: #{tpu_custom_call.1} parent=1 // pred_check
      _
    $region19: #{tpu_custom_call.1} parent=1 // pred_check_branch
      %303 = sbr.rel (0) target = $region21
    $region20: #{tpu_custom_call.1} parent=1 // pred_region
      %s305 = ssub.s32 128, 128
      %306 = vsyncadd [#allocation4], %s305
      %s308 = sshll.u32 [#allocation7], 4
      %s309 = int_to_ptr.vmem [resolvable:$true] %s308
      %311 = dma.vmem_to_hbm [thread:$0]  %s309, 128, %s2, [#allocation4]
    $region21: #{tpu_custom_call.1} parent=1 // pred_fallthru
      _
    // Predicated region
    $region22: #{tpu_custom_call.1} parent=1 // pred_check
      _
    $region23: #{tpu_custom_call.1} parent=1 // pred_check_branch
      %313 = sbr.rel (0) target = $region25
    $region24: #{tpu_custom_call.1} parent=1 // pred_region
      %314 = dma.done [#allocation4], 128
    $region25: #{tpu_custom_call.1} parent=1 // pred_fallthru
      _
    %315 = vsyncpa [#allocation3], 1
    %316 = vsyncpa [#allocation6], 1
    %317 = vsyncpa [#allocation4], 1

</llo_original>
